<compile_context>
chip_gen: v5e
topology: v5e:2x2
jax: 0.10.0
libtpu: 0.0.40
codegen_flags: <defaults>
</compile_context>

<pallas_src>
import jax
import jax.numpy as jnp
from jax.experimental import pallas as pl
from jax.experimental.pallas import tpu as pltpu

_LANES = 128
_TARGET_BLOCK_BYTES = 2 * 1024 * 1024   # ~2 MiB per block; ~4x when double-buffered


# ----------------------------------------------------------------------------
# Kernel
# ----------------------------------------------------------------------------
def _swish_kernel(x_ref, o_ref):
    """Elementwise swish on one (tile_rows, W) VMEM tile."""
    x = x_ref[...].astype(jnp.float32)
    # Numerically stable sigmoid: exp(-|x|) never overflows.
    z = jnp.exp(-jnp.abs(x))                       # EUP
    sig = jnp.where(x >= 0, 1.0, z) / (1.0 + z)    # VPU
    o_ref[...] = (x * sig).astype(o_ref.dtype)


# ----------------------------------------------------------------------------
# Layout helpers
# ----------------------------------------------------------------------------
def _sublanes_for(dtype):
    """Native sublane packing: 8 rows (4B dtypes), 16 (2B), 32 (1B)."""
    itemsize = jnp.dtype(dtype).itemsize
    return max(8, 32 // itemsize)


def _choose_lane_width(total):
    """Widest lane-dense last dim (multiple of 128) dividing `total`.

    Returns (W, needs_padding)."""
    for w in (4096, 2048, 1024, 512, 256, 128):
        if total % w == 0:
            return w, False
    return _LANES, True


def _choose_tile_rows(rows, row_bytes, sub):
    """~2 MiB blocks, row count a multiple of `sub`; keep grid >= 2 when there
    is enough work so v7x megacore can shard the 'parallel' axis."""
    target = max(sub, (_TARGET_BLOCK_BYTES // max(row_bytes, 1)) // sub * sub)
    if rows > target:
        return target
    if rows >= 2 * sub:
        half = -(-rows // 2)                  # ceil(rows / 2)
        return -(-half // sub) * sub          # round up to multiple of sub
    return rows                               # tiny input: one full-extent block


# ----------------------------------------------------------------------------
# Wrapper
# ----------------------------------------------------------------------------
def swish(x):
    """x * sigmoid(x) for an arbitrary-shaped array via one Pallas call."""
    orig_shape = x.shape
    dtype = x.dtype
    total = x.size
    itemsize = jnp.dtype(dtype).itemsize
    sub = _sublanes_for(dtype)

    w, needs_pad = _choose_lane_width(total)
    flat = x.reshape(-1)                      # contiguous reshape: free in XLA
    if needs_pad:
        # Ragged sizes only: pad up to one (sub, 128) tile multiple.
        chunk = sub * _LANES
        padded = -(-total // chunk) * chunk
        flat = jnp.pad(flat, (0, padded - total))
    else:
        padded = total

    rows = padded // w
    x2 = flat.reshape(rows, w)

    tile_rows = _choose_tile_rows(rows, w * itemsize, sub)
    grid = (pl.cdiv(rows, tile_rows),)

    out2 = pl.pallas_call(
        _swish_kernel,
        out_shape=jax.ShapeDtypeStruct((rows, w), dtype),
        grid=grid,
        in_specs=[pl.BlockSpec((tile_rows, w), lambda i: (i, 0))],
        out_specs=pl.BlockSpec((tile_rows, w), lambda i: (i, 0)),
        compiler_params=pltpu.CompilerParams(
            dimension_semantics=("parallel",)),
        cost_estimate=pl.CostEstimate(
            flops=6 * total,
            transcendentals=total,
            bytes_accessed=2 * total * itemsize),
    )(x2)

    if needs_pad:
        return out2.reshape(-1)[:total].reshape(orig_shape)
    return out2.reshape(orig_shape)


# ----------------------------------------------------------------------------
if __name__ == "__main__":
    key = jax.random.PRNGKey(0)

    def _ref(x):
        xf = x.astype(jnp.float32)
        return (xf * jax.nn.sigmoid(xf)).astype(x.dtype)

    # Primary shape implied by the module's elementwise forward.
    x1 = jax.random.normal(key, (2, 4, 16, 16), jnp.float32)
    y1 = jax.block_until_ready(swish(x1))
    assert y1.shape == x1.shape
    assert jnp.allclose(y1, _ref(x1), rtol=1e-5, atol=1e-5), "f32 mismatch"

    # Non-dividing row count -> exercises the masked boundary block (grid=2).
    x2 = jax.random.normal(jax.random.PRNGKey(1), (16, 1000), jnp.float32)
    y2 = jax.block_until_ready(swish(x2))
    assert jnp.allclose(y2, _ref(x2), rtol=1e-5, atol=1e-5), "boundary mismatch"

    # Genuinely ragged size -> exercises the (rare) padded fallback path.
    x3 = jax.random.normal(jax.random.PRNGKey(2), (3, 5, 67), jnp.float32)
    y3 = jax.block_until_ready(swish(x3))
    assert jnp.allclose(y3, _ref(x3), rtol=1e-5, atol=1e-5), "ragged mismatch"

    # bf16: dtype-aware sublane packing, I/O in bf16, f32 compute in-kernel.
    x4 = jax.random.normal(jax.random.PRNGKey(3), (2, 4, 16, 16), jnp.bfloat16)
    y4 = jax.block_until_ready(swish(x4))
    assert jnp.allclose(y4.astype(jnp.float32), _ref(x4).astype(jnp.float32),
                        rtol=1e-2, atol=1e-2), "bf16 mismatch"

    print("KERNEL_OK")
</pallas_src>

<mosaic_0001>
module attributes {stable_mosaic.version = 11 : i64} {
  func.func @_swish_kernel(%arg0: i32, %arg1: memref<1x2048xf32, #tpu.memory_space<vmem>>, %arg2: memref<1x2048xf32, #tpu.memory_space<vmem>>) attributes {dimension_semantics = [#tpu.dimension_semantics<parallel>], iteration_bounds = array<i64: 1>, scalar_prefetch = 0 : i64, scratch_operands = 0 : i64, tpu.core_type = #tpu.core_type<tc>, window_params = [{transform_indices = @transform_0, window_bounds = array<i64: 1, 2048>}, {transform_indices = @transform_1, window_bounds = array<i64: 1, 2048>}]} {
    %c0 = arith.constant 0 : index
    %c0_0 = arith.constant 0 : index
    %0 = vector.load %arg1[%c0, %c0_0] : memref<1x2048xf32, #tpu.memory_space<vmem>>, vector<1x2048xf32>
    %1 = math.absf %0 : vector<1x2048xf32>
    %cst = arith.constant 0.000000e+00 : f32
    %2 = vector.broadcast %cst : f32 to vector<1x2048xf32>
    %3 = arith.subf %2, %1 : vector<1x2048xf32>
    %4 = math.exp %3 : vector<1x2048xf32>
    %cst_1 = arith.constant 0.000000e+00 : f32
    %5 = vector.broadcast %cst_1 : f32 to vector<1x2048xf32>
    %6 = arith.cmpf oge, %0, %5 : vector<1x2048xf32>
    %cst_2 = arith.constant 1.000000e+00 : f32
    %7 = vector.broadcast %cst_2 : f32 to vector<1x2048xf32>
    %8 = arith.select %6, %7, %4 : vector<1x2048xi1>, vector<1x2048xf32>
    %cst_3 = arith.constant 1.000000e+00 : f32
    %9 = vector.broadcast %cst_3 : f32 to vector<1x2048xf32>
    %10 = arith.addf %9, %4 : vector<1x2048xf32>
    %11 = arith.divf %8, %10 : vector<1x2048xf32>
    %12 = arith.mulf %0, %11 : vector<1x2048xf32>
    %c0_4 = arith.constant 0 : index
    %c0_5 = arith.constant 0 : index
    %13 = vector.load %arg2[%c0_4, %c0_5] : memref<1x2048xf32, #tpu.memory_space<vmem>>, vector<1x2048xf32>
    tpu.vector_store %arg2[%c0_4, %c0_5], %12 {strides = array<i32>} : memref<1x2048xf32, #tpu.memory_space<vmem>>, vector<1x2048xf32>,
    return
  }
  func.func @transform_0(%arg0: i32) -> (i32, i32) {
    %c0_i32 = arith.constant 0 : i32
    %c0_i32_0 = arith.constant 0 : i32
    return %arg0, %c0_i32 : i32, i32
  }
  func.func @transform_1(%arg0: i32) -> (i32, i32) {
    %c0_i32 = arith.constant 0 : i32
    %c0_i32_0 = arith.constant 0 : i32
    return %arg0, %c0_i32 : i32, i32
  }
}

</mosaic_0001>

<llo_original>
// kernel: tpu_custom_call.1
$region0: #{tpu_custom_call.1}
  #allocation0 [shape = 'u32[]', space=smem, size = 0x4, offset = 0x4, fixed_abs, tag = 'smem constant byte address 0x4 - core index']
  #allocation1 [shape = 'u32[72,128]{1,0:T(1,128)}', space=vmem, size = 0x9000, scoped, tag = 'internal scratch']
  %s0 = inlined_call_operand.hbm [shape: f32[1,2048], index: 0, kind: input, shape index: {}]
  %s1 = inlined_call_operand.hbm [shape: f32[1,2048], index: 1, kind: output, shape index: {}]
  %s2 = sld [smem:[#allocation0]]
  $region18: #{tpu_custom_call.1} parent=0
    _
  %s4 = ssub.s32 1, %s2
  %s5 = scalar_select 0, %s4, %s2
  $region1: #{tpu_custom_call.1} parent=0
    #allocation2 [shape = 'u8[8192]{0}', space=vmem, size = 0x2000, scoped, tag = 'input window, operand 0, single buffered']
    #allocation3 [shape = 's32[1]{0}', space=sflag, size = 0x4, scoped, tag = 'scoped memory for tpu_custom_call.1']
    #allocation4 [shape = 's32[1]{0}', space=sflag, size = 0x4, scoped, tag = 'scoped memory for tpu_custom_call.1']
    #allocation5 [shape = 'u8[8192]{0}', space=vmem, size = 0x2000, scoped, tag = 'output window, operand 0, single buffered']
    %6 = vsyncpa [#allocation3], 0
    %7 = vsyncpa [#allocation4], 0
    // Predicated region
    $region2: #{tpu_custom_call.1} parent=1 // pred_check
      _
    $region3: #{tpu_custom_call.1} parent=1 // pred_check_branch
      %9 = sbr.rel (0) target = $region5
    $region4: #{tpu_custom_call.1} parent=1 // pred_region
      %11 = vsyncadd [#allocation3], 0
      %s13 = sshll.u32 %s0, 4
      %s14 = int_to_ptr.hbm [resolvable:$true] %s13
      %s15 = sshll.u32 [#allocation2], 4
      %s16 = int_to_ptr.vmem [resolvable:$true] %s15
      %18 = dma.hbm_to_vmem [thread:$0]  %s14, 256, %s16, [#allocation3]
    $region5: #{tpu_custom_call.1} parent=1 // pred_fallthru
      _
    // Predicated region
    $region6: #{tpu_custom_call.1} parent=1 // pred_check
      _
    $region7: #{tpu_custom_call.1} parent=1 // pred_check_branch
      %20 = sbr.rel (0) target = $region9
    $region8: #{tpu_custom_call.1} parent=1 // pred_region
      %22 = dma.done [#allocation3], 256
    $region9: #{tpu_custom_call.1} parent=1 // pred_fallthru
      _
    %v23 = vld [vmem:[#allocation2] sm:$0xff]
    %v24 = vld [vmem:[#allocation2 + $0x8] sm:$0xff]
    %v25 = vand.u32 2147483647, %v23
    %v26 = vand.u32 2147483647, %v24
    %v27 = vsub.f32 0.0, %v25
    %v28 = vsub.f32 0.0, %v26
    %v29 = vmul.f32 %v27, 1.442695
    %v30 = vpow.pop %v29
    %v31 = vmul.f32 %v28, 1.442695
    %v32 = vpow.pop %v31
    %vm33 = vcmp.ge.f32.partialorder %v23, 0.0
    %vm34 = vcmp.ge.f32.partialorder %v24, 0.0
    %v35 = vsel %vm33, 1.0, %v30
    %v36 = vsel %vm34, 1.0, %v32
    %v37 = vadd.f32 %v30, 1.0
    %v38 = vadd.f32 %v32, 1.0
    %v39 = vrcp.pop %v37
    %v40 = vmul.f32 %v37, %v39
    %v41 = vsub.f32 1.0, %v40
    %v42 = vmul.f32 %v39, %v41
    %v43 = vadd.f32 %v39, %v42
    %vm44 = vweird.f32 %v37
    %vm45 = vweird.f32 %v39
    %vm46 = vmor %vm44, %vm45
    %v47 = vsel %vm46, %v39, %v43
    %v48 = vand.u32 2147483647, %v37
    %vm49 = vcmp.eq.f32.partialorder %v48, 8.507059e+37
    %v50 = vand.u32 %v37, 2147483648
    %v51 = vor.u32 1.1754944e-38, %v50
    %v52 = vsel %vm49, %v51, %v47
    %v53 = vmul.f32 %v35, %v52
    %v54 = vrcp.pop %v38
    %v55 = vmul.f32 %v38, %v54
    %v56 = vsub.f32 1.0, %v55
    %v57 = vmul.f32 %v54, %v56
    %v58 = vadd.f32 %v54, %v57
    %vm59 = vweird.f32 %v38
    %vm60 = vweird.f32 %v54
    %vm61 = vmor %vm59, %vm60
    %v62 = vsel %vm61, %v54, %v58
    %v63 = vand.u32 2147483647, %v38
    %vm64 = vcmp.eq.f32.partialorder %v63, 8.507059e+37
    %v65 = vand.u32 %v38, 2147483648
    %v66 = vor.u32 1.1754944e-38, %v65
    %v67 = vsel %vm64, %v66, %v62
    %v68 = vmul.f32 %v36, %v67
    %v69 = vmul.f32 %v23, %v53
    %v70 = vmul.f32 %v24, %v68
    %71 = vst [vmem:[#allocation5] sm:$0xff] %v69
    %72 = vst [vmem:[#allocation5 + $0x8] sm:$0xff] %v70
    // Predicated region
    $region10: #{tpu_custom_call.1} parent=1 // pred_check
      _
    $region11: #{tpu_custom_call.1} parent=1 // pred_check_branch
      %74 = sbr.rel (0) target = $region13
    $region12: #{tpu_custom_call.1} parent=1 // pred_region
      %76 = vsyncadd [#allocation4], 0
      %s78 = sshll.u32 [#allocation5], 4
      %s79 = int_to_ptr.vmem [resolvable:$true] %s78
      %s80 = sshll.u32 %s1, 4
      %s81 = int_to_ptr.hbm [resolvable:$true] %s80
      %83 = dma.vmem_to_hbm [thread:$0]  %s79, 256, %s81, [#allocation4]
    $region13: #{tpu_custom_call.1} parent=1 // pred_fallthru
      _
    // Predicated region
    $region14: #{tpu_custom_call.1} parent=1 // pred_check
      _
    $region15: #{tpu_custom_call.1} parent=1 // pred_check_branch
      %85 = sbr.rel (0) target = $region17
    $region16: #{tpu_custom_call.1} parent=1 // pred_region
      %87 = dma.done [#allocation4], 256
    $region17: #{tpu_custom_call.1} parent=1 // pred_fallthru
      _
    %88 = vsyncpa [#allocation3], 1
    %89 = vsyncpa [#allocation4], 1

</llo_original>
